<compile_context>
chip_gen: v7x
topology: tpu7x:2x2x1
jax: 0.10.0
libtpu: 0.0.40
codegen_flags: <defaults>
</compile_context>

<pallas_src>
import jax
import jax.numpy as jnp
from jax.experimental import pallas as pl
from jax.experimental.pallas import tpu as pltpu

_EPS = 1e-5


def _round_up(n, m):
    return ((n + m - 1) // m) * m


def _vmem_budget_bytes():
    """Generation-aware VMEM limit: ~3/4 of physical, capped at 100 MiB.

    v7x (64 MiB physical) -> ~48 MiB, v5e/v6e (128 MiB) -> ~96 MiB.
    Falls back to the conservative v7x figure if the query is unavailable.
    """
    cap = 64 * 1024 * 1024
    try:
        info = pltpu.get_tpu_info()
        cap = int(getattr(info, "vmem_capacity_bytes", cap))
    except Exception:
        pass
    return min(cap * 3 // 4, 100 * 1024 * 1024)


def _tile_plan(N, D, x_bytes, o_bytes, tile_rows, tile_cols, vmem_limit):
    """Pick (resident, tr, tc) so the per-step working set fits VMEM."""
    usable = int(vmem_limit * 0.85)          # headroom for compiler scratch

    def footprint(tr, tc, w_bufs):
        return (2 * tr * D * x_bytes         # double-buffered x rows
                + w_bufs * D * tc * 2        # bf16 weight tile(s)
                + 2 * tr * tc * o_bytes      # double-buffered output tile
                + 6 * D * 4)                 # gamma / beta / bias

    tr = max(8, min(_round_up(tile_rows, 8), _round_up(N, 8)))

    # Preferred mode: whole (D, D) bf16 weight resident (constant index map ->
    # fetched from HBM once); the matmul then runs MXU-bound.
    if footprint(8, D, 2) <= usable:
        while footprint(tr, D, 2) > usable and tr > 8:
            tr = max(8, tr // 2)
        return True, tr, D

    # Streamed mode (very large D): bound VMEM by tiling the weight's output
    # columns.  The weight is re-read once per row tile, so keep tr as large
    # as possible (arithmetic intensity ~= tr flops per weight byte; break-even
    # ~700 on v6e, ~310 on v7x, ~240 on v5e) and shrink tc first.
    tc = max(128, min(_round_up(tile_cols, 128), _round_up(D, 128)))
    while footprint(tr, tc, 2) > usable and tc > 128:
        tc = max(128, tc // 2)
    while footprint(tr, tc, 2) > usable and tr > 8:
        tr = max(8, tr // 2)
    return False, tr, tc


def prenorm_linear_kernel(x_ref, gamma_ref, beta_ref, w_ref, b_ref, o_ref):
    # LayerNorm in f32 over the last dim (biased variance, eps, affine).
    x = x_ref[...].astype(jnp.float32)
    mean = jnp.mean(x, axis=-1, keepdims=True)
    centered = x - mean
    var = jnp.mean(centered * centered, axis=-1, keepdims=True)
    y = centered * jax.lax.rsqrt(var + _EPS) * gamma_ref[...] + beta_ref[...]
    # fn = Linear: bf16 x bf16 on the MXU with f32 accumulation.
    out = jnp.dot(y.astype(w_ref.dtype), w_ref[...],
                  preferred_element_type=jnp.float32)
    o_ref[...] = (out + b_ref[...]).astype(o_ref.dtype)


def prenorm_linear(x, gamma, beta, w, b, *, tile_rows=512, tile_cols=512,
                   out_dtype=None, vmem_limit_bytes=None):
    """x: (B, S, D).  Returns fn(LayerNorm(x)) with fn = Linear(D, D).

    `w` should be stored in bf16 at init time (cast once by the caller); the
    per-call cast here is only a fallback.
    """
    B, S, D = x.shape
    N = B * S
    if out_dtype is None:
        out_dtype = x.dtype
    x_bytes = jnp.dtype(x.dtype).itemsize
    o_bytes = jnp.dtype(out_dtype).itemsize

    if vmem_limit_bytes is None:
        vmem_limit_bytes = _vmem_budget_bytes()

    resident, tr, tc = _tile_plan(N, D, x_bytes, o_bytes,
                                  tile_rows, tile_cols, vmem_limit_bytes)

    x2 = x.reshape(N, D)
    gamma2 = gamma.reshape(1, D).astype(jnp.float32)
    beta2 = beta.reshape(1, D).astype(jnp.float32)
    b2 = b.reshape(1, D).astype(jnp.float32)
    w_in = w if w.dtype == jnp.bfloat16 else w.astype(jnp.bfloat16)

    if resident:
        # 1-D grid over row tiles; weight/gamma/beta/bias blocks are constant
        # across the grid so they are fetched once and stay resident in VMEM.
        grid = (pl.cdiv(N, tr),)
        in_specs = [
            pl.BlockSpec((tr, D), lambda i: (i, 0)),   # x rows
            pl.BlockSpec((1, D), lambda i: (0, 0)),    # LN gamma
            pl.BlockSpec((1, D), lambda i: (0, 0)),    # LN beta
            pl.BlockSpec((D, D), lambda i: (0, 0)),    # resident fn weight
            pl.BlockSpec((1, D), lambda i: (0, 0)),    # fn bias
        ]
        out_specs = pl.BlockSpec((tr, D), lambda i: (i, 0))
        dim_sem = ("parallel",)
        weight_reads = 1
        ln_passes = 1
    else:
        # 2-D grid: rows x weight-output-column tiles.  LN is recomputed per
        # column tile (the x block index is constant along j, so no extra HBM
        # traffic), which keeps the kernel stateless across grid steps and
        # lets both axes shard across TensorCores.
        grid = (pl.cdiv(N, tr), pl.cdiv(D, tc))
        in_specs = [
            pl.BlockSpec((tr, D), lambda i, j: (i, 0)),   # x rows
            pl.BlockSpec((1, D), lambda i, j: (0, 0)),    # LN gamma
            pl.BlockSpec((1, D), lambda i, j: (0, 0)),    # LN beta
            pl.BlockSpec((D, tc), lambda i, j: (0, j)),   # streamed fn weight
            pl.BlockSpec((1, tc), lambda i, j: (0, j)),   # fn bias
        ]
        out_specs = pl.BlockSpec((tr, tc), lambda i, j: (i, j))
        dim_sem = ("parallel", "parallel")
        weight_reads = pl.cdiv(N, tr)
        ln_passes = pl.cdiv(D, tc)

    cost = pl.CostEstimate(
        flops=2 * N * D * D,
        transcendentals=N * ln_passes,                    # one rsqrt per row per LN pass
        bytes_accessed=(N * D * x_bytes                   # x read
                        + N * D * o_bytes                 # out write
                        + weight_reads * D * D * 2        # bf16 weight read(s)
                        + 3 * D * 4),                     # gamma/beta/bias
    )

    out = pl.pallas_call(
        prenorm_linear_kernel,
        out_shape=jax.ShapeDtypeStruct((N, D), out_dtype),
        grid_spec=pltpu.PrefetchScalarGridSpec(
            num_scalar_prefetch=0,
            grid=grid,
            in_specs=in_specs,
            out_specs=out_specs,
        ),
        compiler_params=pltpu.CompilerParams(
            dimension_semantics=dim_sem,
            vmem_limit_bytes=vmem_limit_bytes,
        ),
        cost_estimate=cost,
    )(x2, gamma2, beta2, w_in, b2)

    return out.reshape(B, S, D)


def _reference(x, gamma, beta, w, b):
    mean = jnp.mean(x, axis=-1, keepdims=True)
    var = jnp.mean((x - mean) ** 2, axis=-1, keepdims=True)
    xn = (x - mean) / jnp.sqrt(var + _EPS)
    y = xn * gamma + beta
    return jnp.einsum("bsd,de->bse", y, w) + b


if __name__ == "__main__":
    # Lane-dense small shapes: D = 128 keeps stores full-width vst and feeds
    # the MXU 128-wide operands.
    B, S, D = 2, 8, 128

    key = jax.random.PRNGKey(0)
    kx, kw, kb = jax.random.split(key, 3)

    x = jax.random.normal(kx, (B, S, D), dtype=jnp.float32)

    # nn.LayerNorm default init: weight = ones, bias = zeros (deterministic).
    gamma = jnp.ones((D,), dtype=jnp.float32)
    beta = jnp.zeros((D,), dtype=jnp.float32)

    # fn = Linear(D, D): deterministic random init.
    w_f32 = jax.random.normal(kw, (D, D), dtype=jnp.float32) / jnp.sqrt(D)
    b = jax.random.normal(kb, (D,), dtype=jnp.float32) * 0.01

    # Init-time cast: the fn weight is stored in bf16 once, not per call.
    w_bf16 = w_f32.astype(jnp.bfloat16)

    out = prenorm_linear(x, gamma, beta, w_bf16, b)
    out = jax.block_until_ready(out)

    ref = _reference(x, gamma, beta, w_f32, b)
    assert out.shape == (B, S, D)
    # bf16 matmul operands (f32 accumulation) -> small drift vs f32 reference.
    assert jnp.allclose(out, ref, atol=2e-2, rtol=2e-2), "mismatch vs reference"

    print("KERNEL_OK")
</pallas_src>

<mosaic_0001>
module attributes {stable_mosaic.version = 11 : i64} {
  func.func @prenorm_linear_kernel(%arg0: i32, %arg1: memref<16x128xf32, #tpu.memory_space<vmem>>, %arg2: memref<1x128xf32, #tpu.memory_space<vmem>>, %arg3: memref<1x128xf32, #tpu.memory_space<vmem>>, %arg4: memref<128x128xbf16, #tpu.memory_space<vmem>>, %arg5: memref<1x128xf32, #tpu.memory_space<vmem>>, %arg6: memref<16x128xf32, #tpu.memory_space<vmem>>) attributes {dimension_semantics = [#tpu.dimension_semantics<parallel>], iteration_bounds = array<i64: 1>, scalar_prefetch = 0 : i64, scratch_operands = 0 : i64, tpu.core_type = #tpu.core_type<tc>, window_params = [{transform_indices = @transform_0, window_bounds = array<i64: 16, 128>}, {pipeline_mode = #tpu.pipeline_mode<synchronous>, transform_indices = @transform_1, window_bounds = array<i64: 1, 128>}, {pipeline_mode = #tpu.pipeline_mode<synchronous>, transform_indices = @transform_2, window_bounds = array<i64: 1, 128>}, {pipeline_mode = #tpu.pipeline_mode<synchronous>, transform_indices = @transform_3, window_bounds = array<i64: 128, 128>}, {pipeline_mode = #tpu.pipeline_mode<synchronous>, transform_indices = @transform_4, window_bounds = array<i64: 1, 128>}, {transform_indices = @transform_5, window_bounds = array<i64: 16, 128>}]} {
    %c0 = arith.constant 0 : index
    %c0_0 = arith.constant 0 : index
    %0 = vector.load %arg1[%c0, %c0_0] : memref<16x128xf32, #tpu.memory_space<vmem>>, vector<16x128xf32>
    %cst = arith.constant dense<0.000000e+00> : vector<16xf32>
    %1 = vector.multi_reduction <add>, %0, %cst [1] : vector<16x128xf32> to vector<16xf32>
    %2 = vector.shape_cast %1 : vector<16xf32> to vector<16x1xf32>
    %cst_1 = arith.constant 1.280000e+02 : f32
    %3 = vector.broadcast %cst_1 : f32 to vector<16x1xf32>
    %4 = arith.divf %2, %3 : vector<16x1xf32>
    %5 = vector.broadcast %4 : vector<16x1xf32> to vector<16x128xf32>
    %6 = arith.subf %0, %5 : vector<16x128xf32>
    %7 = arith.mulf %6, %6 : vector<16x128xf32>
    %cst_2 = arith.constant dense<0.000000e+00> : vector<16xf32>
    %8 = vector.multi_reduction <add>, %7, %cst_2 [1] : vector<16x128xf32> to vector<16xf32>
    %9 = vector.shape_cast %8 : vector<16xf32> to vector<16x1xf32>
    %cst_3 = arith.constant 1.280000e+02 : f32
    %10 = vector.broadcast %cst_3 : f32 to vector<16x1xf32>
    %11 = arith.divf %9, %10 : vector<16x1xf32>
    %cst_4 = arith.constant 9.99999974E-6 : f32
    %12 = vector.broadcast %cst_4 : f32 to vector<16x1xf32>
    %13 = arith.addf %11, %12 : vector<16x1xf32>
    %14 = math.rsqrt %13 : vector<16x1xf32>
    %15 = vector.broadcast %14 : vector<16x1xf32> to vector<16x128xf32>
    %16 = arith.mulf %6, %15 : vector<16x128xf32>
    %c0_5 = arith.constant 0 : index
    %c0_6 = arith.constant 0 : index
    %17 = vector.load %arg2[%c0_5, %c0_6] : memref<1x128xf32, #tpu.memory_space<vmem>>, vector<1x128xf32>
    %18 = vector.broadcast %17 : vector<1x128xf32> to vector<16x128xf32>
    %19 = arith.mulf %16, %18 : vector<16x128xf32>
    %c0_7 = arith.constant 0 : index
    %c0_8 = arith.constant 0 : index
    %20 = vector.load %arg3[%c0_7, %c0_8] : memref<1x128xf32, #tpu.memory_space<vmem>>, vector<1x128xf32>
    %21 = vector.broadcast %20 : vector<1x128xf32> to vector<16x128xf32>
    %22 = arith.addf %19, %21 : vector<16x128xf32>
    %23 = arith.truncf %22 : vector<16x128xf32> to vector<16x128xbf16>
    %c0_9 = arith.constant 0 : index
    %c0_10 = arith.constant 0 : index
    %24 = vector.load %arg4[%c0_9, %c0_10] : memref<128x128xbf16, #tpu.memory_space<vmem>>, vector<128x128xbf16>
    %cst_11 = arith.constant dense<0.000000e+00> : vector<16x128xf32>
    %25 = tpu.matmul %23, %24, %cst_11 {dimension_numbers = #tpu.dot_dimension_numbers<[1], [0], [0], [1], [0, 0, 1, 1], [], []>} : vector<16x128xbf16>, vector<128x128xbf16>, vector<16x128xf32> -> vector<16x128xf32>
    %c0_12 = arith.constant 0 : index
    %c0_13 = arith.constant 0 : index
    %26 = vector.load %arg5[%c0_12, %c0_13] : memref<1x128xf32, #tpu.memory_space<vmem>>, vector<1x128xf32>
    %27 = vector.broadcast %26 : vector<1x128xf32> to vector<16x128xf32>
    %28 = arith.addf %25, %27 : vector<16x128xf32>
    %c0_14 = arith.constant 0 : index
    %c0_15 = arith.constant 0 : index
    %29 = vector.load %arg6[%c0_14, %c0_15] : memref<16x128xf32, #tpu.memory_space<vmem>>, vector<16x128xf32>
    tpu.vector_store %arg6[%c0_14, %c0_15], %28 {strides = array<i32>} : memref<16x128xf32, #tpu.memory_space<vmem>>, vector<16x128xf32>,
    return
  }
  func.func @transform_0(%arg0: i32) -> (i32, i32) {
    %c0_i32 = arith.constant 0 : i32
    %c0_i32_0 = arith.constant 0 : i32
    return %arg0, %c0_i32 : i32, i32
  }
  func.func @transform_1(%arg0: i32) -> (i32, i32) {
    %c0_i32 = arith.constant 0 : i32
    %c0_i32_0 = arith.constant 0 : i32
    %c0_i32_1 = arith.constant 0 : i32
    return %c0_i32, %c0_i32_0 : i32, i32
  }
  func.func @transform_2(%arg0: i32) -> (i32, i32) {
    %c0_i32 = arith.constant 0 : i32
    %c0_i32_0 = arith.constant 0 : i32
    %c0_i32_1 = arith.constant 0 : i32
    return %c0_i32, %c0_i32_0 : i32, i32
  }
  func.func @transform_3(%arg0: i32) -> (i32, i32) {
    %c0_i32 = arith.constant 0 : i32
    %c0_i32_0 = arith.constant 0 : i32
    %c0_i32_1 = arith.constant 0 : i32
    return %c0_i32, %c0_i32_0 : i32, i32
  }
  func.func @transform_4(%arg0: i32) -> (i32, i32) {
    %c0_i32 = arith.constant 0 : i32
    %c0_i32_0 = arith.constant 0 : i32
    %c0_i32_1 = arith.constant 0 : i32
    return %c0_i32, %c0_i32_0 : i32, i32
  }
  func.func @transform_5(%arg0: i32) -> (i32, i32) {
    %c0_i32 = arith.constant 0 : i32
    %c0_i32_0 = arith.constant 0 : i32
    return %arg0, %c0_i32 : i32, i32
  }
}

</mosaic_0001>

<llo_original>
// kernel: tpu_custom_call.1
$region0: #{tpu_custom_call.1}
  #allocation0 [shape = 'u32[]', space=smem, size = 0x4, offset = 0x4, fixed_abs, tag = 'smem constant byte address 0x4 - core index']
  #allocation1 [shape = 'u32[144,128]{1,0:T(1,128)}', space=vmem, size = 0x12000, scoped, tag = 'internal scratch']
  %s0 = inlined_call_operand.hbm [shape: f32[16,128], index: 0, kind: input, shape index: {}]
  %s1 = inlined_call_operand.vmem [shape: f32[1,128], index: 1, kind: input, shape index: {}]
  %s2 = inlined_call_operand.vmem [shape: f32[1,128], index: 2, kind: input, shape index: {}]
  %s3 = inlined_call_operand.hbm [shape: bf16[128,128], index: 3, kind: input, shape index: {}]
  %s4 = inlined_call_operand.vmem [shape: f32[1,128], index: 4, kind: input, shape index: {}]
  %s5 = inlined_call_operand.hbm [shape: f32[16,128], index: 5, kind: output, shape index: {}]
  %s6 = sld [smem:[#allocation0]]
  $region38: #{tpu_custom_call.1} parent=0
    _
  %s8 = ssub.s32 1, %s6
  %s9 = scalar_select 0, %s8, %s6
  $region1: #{tpu_custom_call.1} parent=0
    #allocation2 [shape = 'u8[8192]{0}', space=vmem, size = 0x2000, scoped, tag = 'input window, operand 0, single buffered']
    #allocation3 [shape = 's32[1]{0}', space=sflag, size = 0x4, scoped, tag = 'scoped memory for tpu_custom_call.1']
    #allocation4 [shape = 's32[1]{0}', space=sflag, size = 0x4, scoped, tag = 'scoped memory for tpu_custom_call.1']
    #allocation5 [shape = 'u8[32768]{0}', space=vmem, size = 0x8000, scoped, tag = 'input window, operand 3, single buffered']
    #allocation6 [shape = 's32[1]{0}', space=sflag, size = 0x4, scoped, tag = 'scoped memory for tpu_custom_call.1']
    #allocation7 [shape = 'u8[8192]{0}', space=vmem, size = 0x2000, scoped, tag = 'output window, operand 0, single buffered']
    %10 = vsyncpa [#allocation3], 0
    %11 = vsyncpa [#allocation6], 0
    %12 = vsyncpa [#allocation4], 0
    // Predicated region
    $region2: #{tpu_custom_call.1} parent=1 // pred_check
      _
    $region3: #{tpu_custom_call.1} parent=1 // pred_check_branch
      %14 = sbr.rel (0) target = $region5
    $region4: #{tpu_custom_call.1} parent=1 // pred_region
      %s16 = ssub.s32 256, 256
      %17 = vsyncadd [#allocation3], %s16
      %s18 = sshll.u32 [#allocation2], 4
      %s19 = int_to_ptr.vmem [resolvable:$true] %s18
      %24 = dma.hbm_to_vmem [thread:$0]  %s0, 256, %s19, [#allocation3], 128, 128, 8
    $region5: #{tpu_custom_call.1} parent=1 // pred_fallthru
      _
    // Predicated region
    $region6: #{tpu_custom_call.1} parent=1 // pred_check
      _
    $region7: #{tpu_custom_call.1} parent=1 // pred_check_branch
      %26 = sbr.rel (0) target = $region9
    $region8: #{tpu_custom_call.1} parent=1 // pred_region
      _
    $region9: #{tpu_custom_call.1} parent=1 // pred_fallthru
      _
    // Predicated region
    $region10: #{tpu_custom_call.1} parent=1 // pred_check
      _
    $region11: #{tpu_custom_call.1} parent=1 // pred_check_branch
      %28 = sbr.rel (0) target = $region13
    $region12: #{tpu_custom_call.1} parent=1 // pred_region
      _
    $region13: #{tpu_custom_call.1} parent=1 // pred_fallthru
      _
    // Predicated region
    $region14: #{tpu_custom_call.1} parent=1 // pred_check
      _
    $region15: #{tpu_custom_call.1} parent=1 // pred_check_branch
      %30 = sbr.rel (0) target = $region17
    $region16: #{tpu_custom_call.1} parent=1 // pred_region
      %s32 = ssub.s32 1024, 1024
      %33 = vsyncadd [#allocation6], %s32
      %s34 = sshll.u32 [#allocation5], 4
      %s35 = int_to_ptr.vmem [resolvable:$true] %s34
      %40 = dma.hbm_to_vmem [thread:$0]  %s3, 1024, %s35, [#allocation6], 64, 64, 4
    $region17: #{tpu_custom_call.1} parent=1 // pred_fallthru
      _
    // Predicated region
    $region18: #{tpu_custom_call.1} parent=1 // pred_check
      _
    $region19: #{tpu_custom_call.1} parent=1 // pred_check_branch
      %42 = sbr.rel (0) target = $region21
    $region20: #{tpu_custom_call.1} parent=1 // pred_region
      _
    $region21: #{tpu_custom_call.1} parent=1 // pred_fallthru
      _
    // Predicated region
    $region22: #{tpu_custom_call.1} parent=1 // pred_check
      _
    $region23: #{tpu_custom_call.1} parent=1 // pred_check_branch
      %44 = sbr.rel (0) target = $region25
    $region24: #{tpu_custom_call.1} parent=1 // pred_region
      %45 = dma.done [#allocation3], 256
    $region25: #{tpu_custom_call.1} parent=1 // pred_fallthru
      _
    // Predicated region
    $region26: #{tpu_custom_call.1} parent=1 // pred_check
      _
    $region27: #{tpu_custom_call.1} parent=1 // pred_check_branch
      %47 = sbr.rel (0) target = $region29
    $region28: #{tpu_custom_call.1} parent=1 // pred_region
      %48 = dma.done [#allocation6], 1024
    $region29: #{tpu_custom_call.1} parent=1 // pred_fallthru
      _
    %v50 = vld [vmem:[#allocation2] sm:$0xff]
    %v51 = vld [vmem:[#allocation2 + $0x8] sm:$0xff]
    %52 = vadd.xlane.f32.xlu0 %v50
    %v53 = vpop.xlane.xlu0 %52
    %54 = vadd.xlane.f32.xlu0 %v51
    %v55 = vpop.xlane.xlu0 %54
    %v56 = vrcp.pop 128.0
    %v57 = vmul.f32 %v53, %v56
    %v58 = vmul.f32 %v55, %v56
    %v59 = vsub.f32 %v50, %v57
    %v60 = vsub.f32 %v51, %v58
    %v61 = vmul.f32 %v59, %v59
    %v62 = vmul.f32 %v60, %v60
    %63 = vadd.xlane.f32.xlu0 %v61
    %v64 = vpop.xlane.xlu0 %63
    %65 = vadd.xlane.f32.xlu0 %v62
    %v66 = vpop.xlane.xlu0 %65
    %v67 = vmul.f32 %v64, %v56
    %v68 = vmul.f32 %v66, %v56
    %v69 = vadd.f32 %v67, 1e-05
    %v70 = vadd.f32 %v68, 1e-05
    %v71 = vrsqrt.pop %v69
    %v72 = vrsqrt.pop %v70
    %v73 = vmul.f32 %v59, %v71
    %v74 = vmul.f32 %v60, %v72
    %v75 = vld [vmem:[%s1] sm:$0x1]
    %v77 = vlaneseq
    %v78 = vshrl.u32 %v77, 7
    %v79 = vsub.s32 0, %v78
    %v80 = vrot.slane %v75, %v79
    %v82 = vmul.f32 %v73, %v80
    %v83 = vmul.f32 %v74, %v80
    %v84 = vld [vmem:[%s2] sm:$0x1]
    %v86 = vlaneseq
    %v87 = vshrl.u32 %v86, 7
    %v88 = vsub.s32 0, %v87
    %v89 = vrot.slane %v84, %v88
    %v91 = vadd.f32 %v82, %v89
    %v92 = vadd.f32 %v83, %v89
    %v93 = vpack.c.bf16 %v92, %v91
    %v94 = vld [vmem:[#allocation5] sm:$0xf]
    %v95 = vld [vmem:[#allocation5 + $0x4] sm:$0xf]
    %v96 = vld [vmem:[#allocation5 + $0x8] sm:$0xf]
    %v97 = vld [vmem:[#allocation5 + $0xc] sm:$0xf]
    %v98 = vld [vmem:[#allocation5 + $0x10] sm:$0xf]
    %v99 = vld [vmem:[#allocation5 + $0x14] sm:$0xf]
    %v100 = vld [vmem:[#allocation5 + $0x18] sm:$0xf]
    %v101 = vld [vmem:[#allocation5 + $0x1c] sm:$0xf]
    %v102 = vld [vmem:[#allocation5 + $0x20] sm:$0xf]
    %v103 = vld [vmem:[#allocation5 + $0x24] sm:$0xf]
    %v104 = vld [vmem:[#allocation5 + $0x28] sm:$0xf]
    %v105 = vld [vmem:[#allocation5 + $0x2c] sm:$0xf]
    %v106 = vld [vmem:[#allocation5 + $0x30] sm:$0xf]
    %v107 = vld [vmem:[#allocation5 + $0x34] sm:$0xf]
    %v108 = vld [vmem:[#allocation5 + $0x38] sm:$0xf]
    %v109 = vld [vmem:[#allocation5 + $0x3c] sm:$0xf]
    %v110 = vld [vmem:[%s4] sm:$0x1]
    %v112 = vlaneseq
    %v113 = vshrl.u32 %v112, 7
    %v114 = vsub.s32 0, %v113
    %v115 = vrot.slane %v110, %v114
    %v133 = vunpack.c.l.b16 %v94
    %v134 = vunpack.c.l.b16 %v95
    %v135 = vunpack.c.l.b16 %v96
    %v136 = vunpack.c.l.b16 %v97
    %v137 = vunpack.c.l.b16 %v98
    %v138 = vunpack.c.l.b16 %v99
    %v139 = vunpack.c.l.b16 %v100
    %v140 = vunpack.c.l.b16 %v101
    %v141 = vunpack.c.l.b16 %v102
    %v142 = vunpack.c.l.b16 %v103
    %v143 = vunpack.c.l.b16 %v104
    %v144 = vunpack.c.l.b16 %v105
    %v145 = vunpack.c.l.b16 %v106
    %v146 = vunpack.c.l.b16 %v107
    %v147 = vunpack.c.l.b16 %v108
    %v148 = vunpack.c.l.b16 %v109
    %v149 = vpack.c.b16 %v134, %v133
    %v150 = vpack.c.b16 %v136, %v135
    %v151 = vpack.c.b16 %v138, %v137
    %v152 = vpack.c.b16 %v140, %v139
    %v153 = vpack.c.b16 %v142, %v141
    %v154 = vpack.c.b16 %v144, %v143
    %v155 = vpack.c.b16 %v146, %v145
    %v156 = vpack.c.b16 %v148, %v147
    %165 = vmatprep.subr.bf16.mxu0 0
    %166 = vmatpush1.bf16.msra.mxu0 %v149
    %167 = vmatprep.subr.bf16.mxu0 0
    %168 = vmatpush1.bf16.msra.mxu0 %v150
    %169 = vmatprep.subr.bf16.mxu0 0
    %170 = vmatpush1.bf16.msra.mxu0 %v151
    %171 = vmatprep.subr.bf16.mxu0 0
    %172 = vmatpush1.bf16.msra.mxu0 %v152
    %173 = vmatprep.subr.bf16.mxu0 0
    %174 = vmatpush1.bf16.msra.mxu0 %v153
    %175 = vmatprep.subr.bf16.mxu0 0
    %176 = vmatpush1.bf16.msra.mxu0 %v154
    %177 = vmatprep.subr.bf16.mxu0 0
    %178 = vmatpush1.bf16.msra.mxu0 %v155
    %179 = vmatprep.subr.bf16.mxu0 0
    %180 = vmatpush1.bf16.msra.mxu0 %v156
    %181 = vmatprep.subr.bf16.mxu0 0
    %182 = vmatpush1.bf16.msra.mxu0 0
    %183 = vmatprep.subr.bf16.mxu0 0
    %184 = vmatpush1.bf16.msra.mxu0 0
    %185 = vmatprep.subr.bf16.mxu0 0
    %186 = vmatpush1.bf16.msra.mxu0 0
    %187 = vmatprep.subr.bf16.mxu0 0
    %188 = vmatpush1.bf16.msra.mxu0 0
    %189 = vmatprep.subr.bf16.mxu0 0
    %190 = vmatpush1.bf16.msra.mxu0 0
    %191 = vmatprep.subr.bf16.mxu0 0
    %192 = vmatpush1.bf16.msra.mxu0 0
    %193 = vmatprep.subr.bf16.mxu0 0
    %194 = vmatpush1.bf16.msra.mxu0 0
    %195 = vmatprep.subr.bf16.mxu0 0
    %196 = vmatpush1.bf16.msra.mxu0 0
    %197 = vmatprep.mubr.bf16.mxu0 0
    %198 = vmatmul.mubr.bf16.gmra.mrb[0].mxu0 %v93
    %v199 = vpop.f32.mrb[0].mxu0
    %v200 = vadd.f32 %v115, %v199
    %v201 = vpop.f32.mrb[0].mxu0
    %v202 = vpop.f32.mrb[0].mxu0
    %v203 = vadd.f32 %v115, %v202
    %v204 = vpop.f32.mrb[0].mxu0
    %205 = vdwg.mxu0
    %206 = vst [vmem:[#allocation7] sm:$0xff] %v200
    %207 = vst [vmem:[#allocation7 + $0x8] sm:$0xff] %v203
    // Predicated region
    $region30: #{tpu_custom_call.1} parent=1 // pred_check
      _
    $region31: #{tpu_custom_call.1} parent=1 // pred_check_branch
      %209 = sbr.rel (0) target = $region33
    $region32: #{tpu_custom_call.1} parent=1 // pred_region
      %s211 = ssub.s32 256, 256
      %212 = vsyncadd [#allocation4], %s211
      %s213 = sshll.u32 [#allocation7], 4
      %s214 = int_to_ptr.vmem [resolvable:$true] %s213
      %219 = dma.vmem_to_hbm [thread:$0]  %s214, 256, %s5, [#allocation4], 128, 128, 8
    $region33: #{tpu_custom_call.1} parent=1 // pred_fallthru
      _
    // Predicated region
    $region34: #{tpu_custom_call.1} parent=1 // pred_check
      _
    $region35: #{tpu_custom_call.1} parent=1 // pred_check_branch
      %221 = sbr.rel (0) target = $region37
    $region36: #{tpu_custom_call.1} parent=1 // pred_region
      %222 = dma.done [#allocation4], 256
    $region37: #{tpu_custom_call.1} parent=1 // pred_fallthru
      _
    %223 = vsyncpa [#allocation3], 1
    %224 = vsyncpa [#allocation6], 1
    %225 = vsyncpa [#allocation4], 1

</llo_original>
